<compile_context>
chip_gen: v7x
topology: tpu7x:2x2x1
jax: 0.10.0
libtpu: 0.0.40
codegen_flags: <defaults>
</compile_context>

<pallas_src>
import functools
import inspect

import jax
import jax.numpy as jnp
from jax.experimental import pallas as pl
from jax.experimental.pallas import tpu as pltpu


def _cdiv(a, b):
    return -(-a // b)


def _round_up(a, b):
    return _cdiv(a, b) * b


def _device_kind():
    try:
        return jax.devices()[0].device_kind.lower()
    except Exception:
        return ""


def _default_num_chunks():
    # v7x has 2 TensorCores per chip; v5e/v6e have 1 (a parallel chunk axis
    # there only adds padded work / a second stop slab).
    return 2 if "v7" in _device_kind() else 1


def _default_tile_bytes():
    kind = _device_kind()
    if "v7" in kind:
        return 4 << 20   # 3 inputs x 2 buffers x 4 MiB = 24 MiB < 32 MiB scoped
    if "v6" in kind:
        return 2 << 20   # 12 MiB double-buffered; ~roofline already at ~1-2 MiB
    return 1 << 20       # v5e: 6 MiB double-buffered, well under 16 MiB scoped


def _pack_lane_dense(x, n_rows):
    """Flatten `x`, zero-pad, reshape to (n_rows, 128).  Only used for the tiny
    stop tensors (bytes are negligible next to the mel stream)."""
    flat = x.reshape(-1)
    pad = n_rows * 128 - flat.shape[0]
    if pad:
        flat = jnp.pad(flat, (0, pad))
    return flat.reshape(n_rows, 128)


def _loss_kernel(mp_ref, mpp_ref, mt_ref, sp_ref, st_ref,
                 mel_out_ref, stop_out_ref, acc_ref,
                 *, n_rows, n_stop, tiles_per_chunk):
    """Grid = (chunk p [parallel], mel tile k [arbitrary/reduction]).

    mp/mpp/mt_ref : (tile_rows, n_mels) mel tiles in natural layout (streamed).
    sp/st_ref     : (stop_rows_per_chunk, 128) lane-packed stop slab (resident).
    mel_out_ref   : (1, 2, 8, n_mels) per-chunk partial sums of squared errors.
    stop_out_ref  : (1, 8, 128) per-chunk partial BCE sum.
    acc_ref       : VMEM scratch (2, 8, n_mels) f32.
    """
    # NOTE: program ids are read at the top level (never inside pl.when bodies).
    p = pl.program_id(0)
    k = pl.program_id(1)
    n_k = pl.num_programs(1)

    @pl.when(k == 0)
    def _():
        acc_ref[...] = jnp.zeros_like(acc_ref)

    tr = mp_ref.shape[0]
    nm = mp_ref.shape[1]

    # Mask rows past the true end of the (unpadded) mel data.  The index map is
    # clamped, so an "extra" tile re-reads the last real tile; this mask (based
    # on the *unclamped* logical tile index) zeroes its contribution.
    tile_idx = p * tiles_per_chunk + k
    row_start = tile_idx * tr
    row_ids = jax.lax.broadcasted_iota(jnp.int32, (tr, 1), 0)
    valid = (row_ids + row_start) < n_rows

    mt = mt_ref[...].astype(jnp.float32)
    d1 = mp_ref[...].astype(jnp.float32) - mt
    d2 = mpp_ref[...].astype(jnp.float32) - mt
    sq1 = jnp.where(valid, d1 * d1, 0.0)   # select, not multiply: OOB NaN/Inf safe
    sq2 = jnp.where(valid, d2 * d2, 0.0)

    # (tr, nm) -> (tr//8, 8, nm) is aligned with the native sublane tiling,
    # so this folds the tile with pure VPU adds.
    acc_ref[0] += jnp.sum(sq1.reshape(tr // 8, 8, nm), axis=0)
    acc_ref[1] += jnp.sum(sq2.reshape(tr // 8, 8, nm), axis=0)

    @pl.when(k == n_k - 1)
    def _():
        x = sp_ref[...].astype(jnp.float32)
        z = st_ref[...].astype(jnp.float32)
        rows = x.shape[0]
        r_ids = jax.lax.broadcasted_iota(jnp.int32, (rows, 128), 0)
        l_ids = jax.lax.broadcasted_iota(jnp.int32, (rows, 128), 1)
        flat_idx = (p * rows + r_ids) * 128 + l_ids
        # Numerically stable BCE-with-logits: max(x,0) - x*z + log1p(exp(-|x|))
        bce = jnp.maximum(x, 0.0) - x * z + jnp.log1p(jnp.exp(-jnp.abs(x)))
        bce = jnp.where(flat_idx < n_stop, bce, 0.0)

        mel_out_ref[...] = acc_ref[...][None]                       # (1,2,8,nm)
        stop_out_ref[...] = jnp.sum(bce.reshape(rows // 8, 8, 128), axis=0)[None]


def my_loss(mel_pred, mel_pred_postnet, stop_pred, mel_truth, stop_truth,
            *, tile_bytes=None, num_chunks=None):
    """Returns (total_loss, mel_loss, mel_postnet_loss, stop_loss) as f32 scalars."""
    n_mel = mel_pred.size
    n_stop = stop_pred.size
    n_mels = mel_pred.shape[-1]
    n_rows = n_mel // n_mels

    # Free reshapes only (contiguous) -- no HBM pad copies of the mel tensors.
    mp = mel_pred.reshape(n_rows, n_mels)
    mpp = mel_pred_postnet.reshape(n_rows, n_mels)
    mt = mel_truth.reshape(n_rows, n_mels)

    if num_chunks is None:
        num_chunks = _default_num_chunks()
    if tile_bytes is None:
        tile_bytes = _default_tile_bytes()

    SUB = 32  # sublane multiple safe for f32 (8), bf16 (16) and 8-bit (32)
    mel_itemsize = jnp.dtype(mel_pred.dtype).itemsize
    rows_cap = _round_up(n_rows, SUB)
    tile_rows = max(SUB, (tile_bytes // max(n_mels * mel_itemsize, 1)) // SUB * SUB)
    tile_rows = min(tile_rows, rows_cap)

    n_tiles = _cdiv(n_rows, tile_rows)
    num_chunks = max(1, min(num_chunks, n_tiles))
    tiles_per_chunk = _cdiv(n_tiles, num_chunks)
    max_tile = n_tiles - 1

    # ---- lane-pack the stop tensors (tiny; resident per chunk) -------------
    stop_rows_per_chunk = max(SUB, _round_up(_cdiv(_cdiv(n_stop, 128), num_chunks), SUB))
    stop_rows = stop_rows_per_chunk * num_chunks
    sp = _pack_lane_dense(stop_pred, stop_rows)
    st = _pack_lane_dense(stop_truth, stop_rows)

    kernel = functools.partial(_loss_kernel, n_rows=n_rows, n_stop=n_stop,
                               tiles_per_chunk=tiles_per_chunk)

    def mel_idx(p, k):
        # Clamp so extra tiles (when n_tiles % num_chunks != 0) never DMA
        # fully out of bounds; their contribution is masked in-kernel.
        return (jnp.minimum(p * tiles_per_chunk + k, max_tile), 0)

    mel_spec = pl.BlockSpec((tile_rows, n_mels), mel_idx)
    stop_spec = pl.BlockSpec((stop_rows_per_chunk, 128), lambda p, k: (p, 0))

    out_shape = (jax.ShapeDtypeStruct((num_chunks, 2, 8, n_mels), jnp.float32),
                 jax.ShapeDtypeStruct((num_chunks, 8, 128), jnp.float32))
    out_specs = (pl.BlockSpec((1, 2, 8, n_mels), lambda p, k: (p, 0, 0, 0)),
                 pl.BlockSpec((1, 8, 128), lambda p, k: (p, 0, 0)))

    stop_itemsize = jnp.dtype(stop_pred.dtype).itemsize
    cost = pl.CostEstimate(
        flops=6 * n_mel + 8 * n_stop,
        transcendentals=2 * n_stop,
        bytes_accessed=3 * n_mel * mel_itemsize
        + 2 * n_stop * stop_itemsize
        + num_chunks * (2 * 8 * n_mels + 8 * 128) * 4,
    )

    call_kwargs = dict(
        out_shape=out_shape,
        grid=(num_chunks, tiles_per_chunk),
        in_specs=[mel_spec, mel_spec, mel_spec, stop_spec, stop_spec],
        out_specs=out_specs,
        scratch_shapes=[pltpu.VMEM((2, 8, n_mels), jnp.float32)],
        compiler_params=pltpu.CompilerParams(
            dimension_semantics=("parallel", "arbitrary")),
    )
    if "cost_estimate" in inspect.signature(pl.pallas_call).parameters:
        call_kwargs["cost_estimate"] = cost

    mel_partials, stop_partials = pl.pallas_call(kernel, **call_kwargs)(
        mp, mpp, mt, sp, st)

    # Tiny epilogue combine in plain JAX.
    mel_sums = jnp.sum(mel_partials, axis=(0, 2, 3))   # (2,)
    stop_sum = jnp.sum(stop_partials)
    mel_loss = mel_sums[0] / n_mel
    mel_postnet_loss = mel_sums[1] / n_mel
    stop_loss = stop_sum / n_stop
    total = mel_loss + mel_postnet_loss + stop_loss
    return total, mel_loss, mel_postnet_loss, stop_loss


def _reference(mel_pred, mel_pred_postnet, stop_pred, mel_truth, stop_truth):
    mel_loss = jnp.mean((mel_pred - mel_truth) ** 2)
    mel_postnet_loss = jnp.mean((mel_pred_postnet - mel_truth) ** 2)
    x = stop_pred.reshape(-1, 1)
    z = stop_truth.reshape(-1, 1)
    bce = jnp.maximum(x, 0.0) - x * z + jnp.log1p(jnp.exp(-jnp.abs(x)))
    stop_loss = jnp.mean(bce)
    total = mel_loss + mel_postnet_loss + stop_loss
    return total, mel_loss, mel_postnet_loss, stop_loss


if __name__ == "__main__":
    # Small shapes consistent with the forward: mel (B, T, n_mels), stop (B, T).
    B, T, N_MELS = 2, 16, 32
    key = jax.random.PRNGKey(0)
    k1, k2, k3, k4, k5 = jax.random.split(key, 5)

    mel_pred = jax.random.normal(k1, (B, T, N_MELS), dtype=jnp.float32)
    mel_pred_postnet = jax.random.normal(k2, (B, T, N_MELS), dtype=jnp.float32)
    mel_truth = jax.random.normal(k3, (B, T, N_MELS), dtype=jnp.float32)
    stop_pred = jax.random.normal(k4, (B, T), dtype=jnp.float32)
    stop_truth = (jax.random.uniform(k5, (B, T)) > 0.5).astype(jnp.float32)

    # pred = (mel_pred, mel_pred_postnet, stop_pred, _); truth -> (truth[2], truth[3])
    got = my_loss(mel_pred, mel_pred_postnet, stop_pred, mel_truth, stop_truth)
    got = jax.block_until_ready(got)

    ref = _reference(mel_pred, mel_pred_postnet, stop_pred, mel_truth, stop_truth)
    for g, r in zip(got, ref):
        assert jnp.allclose(g, r, rtol=1e-5, atol=1e-5), (g, r)

    print("KERNEL_OK")
</pallas_src>

<mosaic_0001>
module attributes {stable_mosaic.version = 11 : i64} {
  func.func @_loss_kernel(%arg0: i32, %arg1: i32, %arg2: memref<32x32xf32, #tpu.memory_space<vmem>>, %arg3: memref<32x32xf32, #tpu.memory_space<vmem>>, %arg4: memref<32x32xf32, #tpu.memory_space<vmem>>, %arg5: memref<32x128xf32, #tpu.memory_space<vmem>>, %arg6: memref<32x128xf32, #tpu.memory_space<vmem>>, %arg7: memref<1x2x8x32xf32, #tpu.memory_space<vmem>>, %arg8: memref<1x8x128xf32, #tpu.memory_space<vmem>>, %arg9: memref<2x8x32xf32, #tpu.memory_space<vmem>>) attributes {dimension_semantics = [#tpu.dimension_semantics<parallel>, #tpu.dimension_semantics<arbitrary>], iteration_bounds = array<i64: 1, 1>, scalar_prefetch = 0 : i64, scratch_operands = 1 : i64, tpu.core_type = #tpu.core_type<tc>, window_params = [{transform_indices = @transform_0, window_bounds = array<i64: 32, 32>}, {transform_indices = @transform_1, window_bounds = array<i64: 32, 32>}, {transform_indices = @transform_2, window_bounds = array<i64: 32, 32>}, {transform_indices = @transform_3, window_bounds = array<i64: 32, 128>}, {transform_indices = @transform_4, window_bounds = array<i64: 32, 128>}, {transform_indices = @transform_5, window_bounds = array<i64: 1, 2, 8, 32>}, {transform_indices = @transform_6, window_bounds = array<i64: 1, 8, 128>}]} {
    %c0_i32 = arith.constant 0 : i32
    %0 = arith.cmpi eq, %arg1, %c0_i32 : i32
    %1 = arith.extui %0 : i1 to i32
    %c0_i32_0 = arith.constant 0 : i32
    %2 = arith.cmpi ne, %1, %c0_i32_0 : i32
    scf.if %2 {
      %cst_23 = arith.constant 0.000000e+00 : f32
      %45 = vector.broadcast %cst_23 : f32 to vector<2x8x32xf32>
      %c0_24 = arith.constant 0 : index
      %c0_25 = arith.constant 0 : index
      %c0_26 = arith.constant 0 : index
      %46 = vector.load %arg9[%c0_24, %c0_25, %c0_26] : memref<2x8x32xf32, #tpu.memory_space<vmem>>, vector<2x8x32xf32>
      tpu.vector_store %arg9[%c0_24, %c0_25, %c0_26], %45 {strides = array<i32>} : memref<2x8x32xf32, #tpu.memory_space<vmem>>, vector<2x8x32xf32>,
    } else {
    }
    %c1_i32 = arith.constant 1 : i32
    %3 = arith.muli %arg0, %c1_i32 : i32
    %4 = arith.addi %3, %arg1 : i32
    %c32_i32 = arith.constant 32 : i32
    %5 = arith.muli %4, %c32_i32 : i32
    %6 = tpu.iota {dimensions = array<i32: 0>} : vector<32x1xi32>
    %7 = vector.broadcast %5 : i32 to vector<32x1xi32>
    %8 = arith.addi %6, %7 : vector<32x1xi32>
    %c32_i32_1 = arith.constant 32 : i32
    %9 = vector.broadcast %c32_i32_1 : i32 to vector<32x1xi32>
    %10 = arith.cmpi slt, %8, %9 : vector<32x1xi32>
    %c0 = arith.constant 0 : index
    %c0_2 = arith.constant 0 : index
    %11 = vector.load %arg4[%c0, %c0_2] : memref<32x32xf32, #tpu.memory_space<vmem>>, vector<32x32xf32>
    %c0_3 = arith.constant 0 : index
    %c0_4 = arith.constant 0 : index
    %12 = vector.load %arg2[%c0_3, %c0_4] : memref<32x32xf32, #tpu.memory_space<vmem>>, vector<32x32xf32>
    %13 = arith.subf %12, %11 : vector<32x32xf32>
    %c0_5 = arith.constant 0 : index
    %c0_6 = arith.constant 0 : index
    %14 = vector.load %arg3[%c0_5, %c0_6] : memref<32x32xf32, #tpu.memory_space<vmem>>, vector<32x32xf32>
    %15 = arith.subf %14, %11 : vector<32x32xf32>
    %16 = arith.mulf %13, %13 : vector<32x32xf32>
    %cst = arith.constant 0.000000e+00 : f32
    %17 = vector.shape_cast %10 : vector<32x1xi1> to vector<32x1xi1>
    %18 = vector.broadcast %17 : vector<32x1xi1> to vector<32x32xi1>
    %19 = vector.broadcast %cst : f32 to vector<32x32xf32>
    %20 = arith.select %18, %16, %19 : vector<32x32xi1>, vector<32x32xf32>
    %21 = arith.mulf %15, %15 : vector<32x32xf32>
    %cst_7 = arith.constant 0.000000e+00 : f32
    %22 = vector.shape_cast %10 : vector<32x1xi1> to vector<32x1xi1>
    %23 = vector.broadcast %22 : vector<32x1xi1> to vector<32x32xi1>
    %24 = vector.broadcast %cst_7 : f32 to vector<32x32xf32>
    %25 = arith.select %23, %21, %24 : vector<32x32xi1>, vector<32x32xf32>
    %c0_8 = arith.constant 0 : index
    %c0_9 = arith.constant 0 : index
    %c0_10 = arith.constant 0 : index
    %26 = vector.load %arg9[%c0_8, %c0_9, %c0_10] : memref<2x8x32xf32, #tpu.memory_space<vmem>>, vector<1x8x32xf32>
    %27 = vector.shape_cast %26 : vector<1x8x32xf32> to vector<8x32xf32>
    %28 = vector.shape_cast %20 : vector<32x32xf32> to vector<4x8x32xf32>
    %cst_11 = arith.constant dense<0.000000e+00> : vector<8x32xf32>
    %29 = vector.multi_reduction <add>, %28, %cst_11 [0] : vector<4x8x32xf32> to vector<8x32xf32>
    %30 = arith.addf %27, %29 : vector<8x32xf32>
    %c0_12 = arith.constant 0 : index
    %c0_13 = arith.constant 0 : index
    %c0_14 = arith.constant 0 : index
    %31 = vector.load %arg9[%c0_12, %c0_13, %c0_14] : memref<2x8x32xf32, #tpu.memory_space<vmem>>, vector<1x8x32xf32>
    %32 = vector.shape_cast %31 : vector<1x8x32xf32> to vector<8x32xf32>
    %33 = vector.shape_cast %30 : vector<8x32xf32> to vector<1x8x32xf32>
    tpu.vector_store %arg9[%c0_12, %c0_13, %c0_14], %33 {strides = array<i32>} : memref<2x8x32xf32, #tpu.memory_space<vmem>>, vector<1x8x32xf32>,
    %c1 = arith.constant 1 : index
    %c0_15 = arith.constant 0 : index
    %c0_16 = arith.constant 0 : index
    %34 = vector.load %arg9[%c1, %c0_15, %c0_16] : memref<2x8x32xf32, #tpu.memory_space<vmem>>, vector<1x8x32xf32>
    %35 = vector.shape_cast %34 : vector<1x8x32xf32> to vector<8x32xf32>
    %36 = vector.shape_cast %25 : vector<32x32xf32> to vector<4x8x32xf32>
    %cst_17 = arith.constant dense<0.000000e+00> : vector<8x32xf32>
    %37 = vector.multi_reduction <add>, %36, %cst_17 [0] : vector<4x8x32xf32> to vector<8x32xf32>
    %38 = arith.addf %35, %37 : vector<8x32xf32>
    %c1_18 = arith.constant 1 : index
    %c0_19 = arith.constant 0 : index
    %c0_20 = arith.constant 0 : index
    %39 = vector.load %arg9[%c1_18, %c0_19, %c0_20] : memref<2x8x32xf32, #tpu.memory_space<vmem>>, vector<1x8x32xf32>
    %40 = vector.shape_cast %39 : vector<1x8x32xf32> to vector<8x32xf32>
    %41 = vector.shape_cast %38 : vector<8x32xf32> to vector<1x8x32xf32>
    tpu.vector_store %arg9[%c1_18, %c0_19, %c0_20], %41 {strides = array<i32>} : memref<2x8x32xf32, #tpu.memory_space<vmem>>, vector<1x8x32xf32>,
    %c0_i32_21 = arith.constant 0 : i32
    %42 = arith.cmpi eq, %arg1, %c0_i32_21 : i32
    %43 = arith.extui %42 : i1 to i32
    %c0_i32_22 = arith.constant 0 : i32
    %44 = arith.cmpi ne, %43, %c0_i32_22 : i32
    scf.if %44 {
      %c0_23 = arith.constant 0 : index
      %c0_24 = arith.constant 0 : index
      %45 = vector.load %arg5[%c0_23, %c0_24] : memref<32x128xf32, #tpu.memory_space<vmem>>, vector<32x128xf32>
      %c0_25 = arith.constant 0 : index
      %c0_26 = arith.constant 0 : index
      %46 = vector.load %arg6[%c0_25, %c0_26] : memref<32x128xf32, #tpu.memory_space<vmem>>, vector<32x128xf32>
      %47 = tpu.iota {dimensions = array<i32: 0>} : vector<32x128xi32>
      %48 = tpu.iota {dimensions = array<i32: 1>} : vector<32x128xi32>
      %c32_i32_27 = arith.constant 32 : i32
      %49 = arith.muli %arg0, %c32_i32_27 : i32
      %50 = vector.broadcast %49 : i32 to vector<32x128xi32>
      %51 = arith.addi %50, %47 : vector<32x128xi32>
      %c128_i32 = arith.constant 128 : i32
      %52 = vector.broadcast %c128_i32 : i32 to vector<32x128xi32>
      %53 = arith.muli %51, %52 : vector<32x128xi32>
      %54 = arith.addi %53, %48 : vector<32x128xi32>
      %cst_28 = arith.constant 0.000000e+00 : f32
      %55 = vector.broadcast %cst_28 : f32 to vector<32x128xf32>
      %56 = arith.maximumf %45, %55 : vector<32x128xf32>
      %57 = arith.mulf %45, %46 : vector<32x128xf32>
      %58 = arith.subf %56, %57 : vector<32x128xf32>
      %59 = math.absf %45 : vector<32x128xf32>
      %cst_29 = arith.constant 0.000000e+00 : f32
      %60 = vector.broadcast %cst_29 : f32 to vector<32x128xf32>
      %61 = arith.subf %60, %59 : vector<32x128xf32>
      %62 = math.exp %61 : vector<32x128xf32>
      %63 = math.log1p %62 : vector<32x128xf32>
      %64 = arith.addf %58, %63 : vector<32x128xf32>
      %c32_i32_30 = arith.constant 32 : i32
      %65 = vector.broadcast %c32_i32_30 : i32 to vector<32x128xi32>
      %66 = arith.cmpi slt, %54, %65 : vector<32x128xi32>
      %cst_31 = arith.constant 0.000000e+00 : f32
      %67 = vector.broadcast %cst_31 : f32 to vector<32x128xf32>
      %68 = arith.select %66, %64, %67 : vector<32x128xi1>, vector<32x128xf32>
      %c0_32 = arith.constant 0 : index
      %c0_33 = arith.constant 0 : index
      %c0_34 = arith.constant 0 : index
      %69 = vector.load %arg9[%c0_32, %c0_33, %c0_34] : memref<2x8x32xf32, #tpu.memory_space<vmem>>, vector<2x8x32xf32>
      %70 = vector.shape_cast %69 : vector<2x8x32xf32> to vector<1x2x8x32xf32>
      %c0_35 = arith.constant 0 : index
      %c0_36 = arith.constant 0 : index
      %c0_37 = arith.constant 0 : index
      %c0_38 = arith.constant 0 : index
      %71 = vector.load %arg7[%c0_35, %c0_36, %c0_37, %c0_38] : memref<1x2x8x32xf32, #tpu.memory_space<vmem>>, vector<1x2x8x32xf32>
      tpu.vector_store %arg7[%c0_35, %c0_36, %c0_37, %c0_38], %70 {strides = array<i32>} : memref<1x2x8x32xf32, #tpu.memory_space<vmem>>, vector<1x2x8x32xf32>,
      %72 = vector.shape_cast %68 : vector<32x128xf32> to vector<4x8x128xf32>
      %cst_39 = arith.constant dense<0.000000e+00> : vector<8x128xf32>
      %73 = vector.multi_reduction <add>, %72, %cst_39 [0] : vector<4x8x128xf32> to vector<8x128xf32>
      %74 = vector.shape_cast %73 : vector<8x128xf32> to vector<1x8x128xf32>
      %c0_40 = arith.constant 0 : index
      %c0_41 = arith.constant 0 : index
      %c0_42 = arith.constant 0 : index
      %75 = vector.load %arg8[%c0_40, %c0_41, %c0_42] : memref<1x8x128xf32, #tpu.memory_space<vmem>>, vector<1x8x128xf32>
      tpu.vector_store %arg8[%c0_40, %c0_41, %c0_42], %74 {strides = array<i32>} : memref<1x8x128xf32, #tpu.memory_space<vmem>>, vector<1x8x128xf32>,
    } else {
    }
    return
  }
  func.func @transform_0(%arg0: i32, %arg1: i32) -> (i32, i32) {
    %c1_i32 = arith.constant 1 : i32
    %0 = arith.muli %arg0, %c1_i32 : i32
    %1 = arith.addi %0, %arg1 : i32
    %c0_i32 = arith.constant 0 : i32
    %2 = arith.minsi %1, %c0_i32 : i32
    %c0_i32_0 = arith.constant 0 : i32
    %c0_i32_1 = arith.constant 0 : i32
    return %2, %c0_i32_0 : i32, i32
  }
  func.func @transform_1(%arg0: i32, %arg1: i32) -> (i32, i32) {
    %c1_i32 = arith.constant 1 : i32
    %0 = arith.muli %arg0, %c1_i32 : i32
    %1 = arith.addi %0, %arg1 : i32
    %c0_i32 = arith.constant 0 : i32
    %2 = arith.minsi %1, %c0_i32 : i32
    %c0_i32_0 = arith.constant 0 : i32
    %c0_i32_1 = arith.constant 0 : i32
    return %2, %c0_i32_0 : i32, i32
  }
  func.func @transform_2(%arg0: i32, %arg1: i32) -> (i32, i32) {
    %c1_i32 = arith.constant 1 : i32
    %0 = arith.muli %arg0, %c1_i32 : i32
    %1 = arith.addi %0, %arg1 : i32
    %c0_i32 = arith.constant 0 : i32
    %2 = arith.minsi %1, %c0_i32 : i32
    %c0_i32_0 = arith.constant 0 : i32
    %c0_i32_1 = arith.constant 0 : i32
    return %2, %c0_i32_0 : i32, i32
  }
  func.func @transform_3(%arg0: i32, %arg1: i32) -> (i32, i32) {
    %c0_i32 = arith.constant 0 : i32
    %c0_i32_0 = arith.constant 0 : i32
    return %arg0, %c0_i32 : i32, i32
  }
  func.func @transform_4(%arg0: i32, %arg1: i32) -> (i32, i32) {
    %c0_i32 = arith.constant 0 : i32
    %c0_i32_0 = arith.constant 0 : i32
    return %arg0, %c0_i32 : i32, i32
  }
  func.func @transform_5(%arg0: i32, %arg1: i32) -> (i32, i32, i32, i32) {
    %c0_i32 = arith.constant 0 : i32
    %c0_i32_0 = arith.constant 0 : i32
    %c0_i32_1 = arith.constant 0 : i32
    %c0_i32_2 = arith.constant 0 : i32
    return %arg0, %c0_i32, %c0_i32_0, %c0_i32_1 : i32, i32, i32, i32
  }
  func.func @transform_6(%arg0: i32, %arg1: i32) -> (i32, i32, i32) {
    %c0_i32 = arith.constant 0 : i32
    %c0_i32_0 = arith.constant 0 : i32
    %c0_i32_1 = arith.constant 0 : i32
    return %arg0, %c0_i32, %c0_i32_0 : i32, i32, i32
  }
}

</mosaic_0001>

<llo_original>
// kernel: tpu_custom_call.1
$region0: #{tpu_custom_call.1}
  #allocation0 [shape = 'u32[]', space=smem, size = 0x4, offset = 0x4, fixed_abs, tag = 'smem constant byte address 0x4 - core index']
  #allocation1 [shape = 'u32[144,128]{1,0:T(1,128)}', space=vmem, size = 0x12000, scoped, tag = 'internal scratch']
  #allocation2 [shape = 'f32[2,8,32]{2,1,0:T(8,128)}', space=vmem, size = 0x2000, scoped, tag = 'scratch operand']
  %s0 = inlined_call_operand.hbm [shape: f32[32,32], index: 0, kind: input, shape index: {}]
  %s1 = inlined_call_operand.hbm [shape: f32[32,32], index: 1, kind: input, shape index: {}]
  %s2 = inlined_call_operand.hbm [shape: f32[32,32], index: 2, kind: input, shape index: {}]
  %s3 = inlined_call_operand.hbm [shape: f32[32,128], index: 3, kind: input, shape index: {}]
  %s4 = inlined_call_operand.hbm [shape: f32[32,128], index: 4, kind: input, shape index: {}]
  %s5 = inlined_call_operand.hbm [shape: f32[1,2,8,32], index: 5, kind: output, shape index: {0}]
  %s6 = inlined_call_operand.hbm [shape: f32[1,8,128], index: 6, kind: output, shape index: {1}]
  %7 = xla_tuple %s5, %s6
  %s8 = sld [smem:[#allocation0]]
  $region66: #{tpu_custom_call.1} parent=0
    _
  %s10 = ssub.s32 1, %s8
  %s11 = scalar_select 0, %s10, %s8
  $region1: #{tpu_custom_call.1} parent=0
    #allocation3 [shape = 'u8[16384]{0}', space=vmem, size = 0x4000, scoped, tag = 'input window, operand 0, single buffered']
    #allocation4 [shape = 's32[1]{0}', space=sflag, size = 0x4, scoped, tag = 'scoped memory for tpu_custom_call.1']
    #allocation5 [shape = 's32[1]{0}', space=sflag, size = 0x4, scoped, tag = 'scoped memory for tpu_custom_call.1']
    #allocation6 [shape = 'u8[16384]{0}', space=vmem, size = 0x4000, scoped, tag = 'input window, operand 1, single buffered']
    #allocation7 [shape = 's32[1]{0}', space=sflag, size = 0x4, scoped, tag = 'scoped memory for tpu_custom_call.1']
    #allocation8 [shape = 'u8[16384]{0}', space=vmem, size = 0x4000, scoped, tag = 'input window, operand 2, single buffered']
    #allocation9 [shape = 'u8[16384]{0}', space=vmem, size = 0x4000, scoped, tag = 'input window, operand 3, single buffered']
    #allocation10 [shape = 's32[1]{0}', space=sflag, size = 0x4, scoped, tag = 'scoped memory for tpu_custom_call.1']
    #allocation11 [shape = 'u8[16384]{0}', space=vmem, size = 0x4000, scoped, tag = 'input window, operand 4, single buffered']
    #allocation12 [shape = 'u8[8192]{0}', space=vmem, size = 0x2000, scoped, tag = 'output window, operand 0, single buffered']
    #allocation13 [shape = 'u8[4096]{0}', space=vmem, size = 0x1000, scoped, tag = 'output window, operand 1, single buffered']
    #allocation14 [shape = 's32[1]{0}', space=sflag, size = 0x4, scoped, tag = 'scoped memory for tpu_custom_call.1']
    %12 = vsyncpa [#allocation4], 0
    %13 = vsyncpa [#allocation7], 0
    %14 = vsyncpa [#allocation10], 0
    %15 = vsyncpa [#allocation5], 0
    %16 = vsyncpa [#allocation14], 0
    // Predicated region
    $region2: #{tpu_custom_call.1} parent=1 // pred_check
      _
    $region3: #{tpu_custom_call.1} parent=1 // pred_check_branch
      %18 = sbr.rel (0) target = $region5
    $region4: #{tpu_custom_call.1} parent=1 // pred_region
      %s19 = sadd.s32 0, 0
      %p20 = scmp.lt.s32.totalorder %s19, 0
      %s21 = scalar_select %p20, %s19, 0
      %s22 = smul.u32 4, %s21
      %s24 = ssub.s32 512, 512
      %25 = vsyncadd [#allocation4], %s24
      %s26 = smul.addr %s22, 128
      %s27 = scalar_lea.hbm %s0, %s26
      %s28 = sshll.u32 [#allocation3], 4
      %s29 = int_to_ptr.vmem [resolvable:$true] %s28
      %34 = dma.hbm_to_vmem [thread:$0]  %s27, 512, %s29, [#allocation4], 128, 128, 8
    $region5: #{tpu_custom_call.1} parent=1 // pred_fallthru
      _
    // Predicated region
    $region6: #{tpu_custom_call.1} parent=1 // pred_check
      _
    $region7: #{tpu_custom_call.1} parent=1 // pred_check_branch
      %36 = sbr.rel (0) target = $region9
    $region8: #{tpu_custom_call.1} parent=1 // pred_region
      %s37 = sadd.s32 0, 0
      %p38 = scmp.lt.s32.totalorder %s37, 0
      %s39 = scalar_select %p38, %s37, 0
      %s40 = smul.u32 4, %s39
      %s42 = ssub.s32 512, 512
      %43 = vsyncadd [#allocation7], %s42
      %s44 = smul.addr %s40, 128
      %s45 = scalar_lea.hbm %s1, %s44
      %s46 = sshll.u32 [#allocation6], 4
      %s47 = int_to_ptr.vmem [resolvable:$true] %s46
      %52 = dma.hbm_to_vmem [thread:$0]  %s45, 512, %s47, [#allocation7], 128, 128, 8
    $region9: #{tpu_custom_call.1} parent=1 // pred_fallthru
      _
    // Predicated region
    $region10: #{tpu_custom_call.1} parent=1 // pred_check
      _
    $region11: #{tpu_custom_call.1} parent=1 // pred_check_branch
      %54 = sbr.rel (0) target = $region13
    $region12: #{tpu_custom_call.1} parent=1 // pred_region
      %s55 = sadd.s32 0, 0
      %p56 = scmp.lt.s32.totalorder %s55, 0
      %s57 = scalar_select %p56, %s55, 0
      %s58 = smul.u32 4, %s57
      %s60 = ssub.s32 512, 512
      %61 = vsyncadd [#allocation7], %s60
      %s62 = smul.addr %s58, 128
      %s63 = scalar_lea.hbm %s2, %s62
      %s64 = sshll.u32 [#allocation8], 4
      %s65 = int_to_ptr.vmem [resolvable:$true] %s64
      %70 = dma.hbm_to_vmem [thread:$0]  %s63, 512, %s65, [#allocation7], 128, 128, 8
    $region13: #{tpu_custom_call.1} parent=1 // pred_fallthru
      _
    // Predicated region
    $region14: #{tpu_custom_call.1} parent=1 // pred_check
      _
    $region15: #{tpu_custom_call.1} parent=1 // pred_check_branch
      %72 = sbr.rel (0) target = $region17
    $region16: #{tpu_custom_call.1} parent=1 // pred_region
      %s74 = ssub.s32 512, 512
      %75 = vsyncadd [#allocation10], %s74
      %s76 = sshll.u32 [#allocation9], 4
      %s77 = int_to_ptr.vmem [resolvable:$true] %s76
      %82 = dma.hbm_to_vmem [thread:$0]  %s3, 512, %s77, [#allocation10], 128, 128, 8
    $region17: #{tpu_custom_call.1} parent=1 // pred_fallthru
      _
    // Predicated region
    $region18: #{tpu_custom_call.1} parent=1 // pred_check
      _
    $region19: #{tpu_custom_call.1} parent=1 // pred_check_branch
      %84 = sbr.rel (0) target = $region21
    $region20: #{tpu_custom_call.1} parent=1 // pred_region
      %s86 = ssub.s32 512, 512
      %87 = vsyncadd [#allocation10], %s86
      %s88 = sshll.u32 [#allocation11], 4
      %s89 = int_to_ptr.vmem [resolvable:$true] %s88
      %94 = dma.hbm_to_vmem [thread:$0]  %s4, 512, %s89, [#allocation10], 128, 128, 8
    $region21: #{tpu_custom_call.1} parent=1 // pred_fallthru
      _
    // Predicated region
    $region22: #{tpu_custom_call.1} parent=1 // pred_check
      _
    $region23: #{tpu_custom_call.1} parent=1 // pred_check_branch
      %96 = sbr.rel (0) target = $region25
    $region24: #{tpu_custom_call.1} parent=1 // pred_region
      %97 = dma.done [#allocation4], 512
    $region25: #{tpu_custom_call.1} parent=1 // pred_fallthru
      _
    // Predicated region
    $region26: #{tpu_custom_call.1} parent=1 // pred_check
      _
    $region27: #{tpu_custom_call.1} parent=1 // pred_check_branch
      %99 = sbr.rel (0) target = $region29
    $region28: #{tpu_custom_call.1} parent=1 // pred_region
      %100 = dma.done [#allocation7], 512
    $region29: #{tpu_custom_call.1} parent=1 // pred_fallthru
      _
    // Predicated region
    $region30: #{tpu_custom_call.1} parent=1 // pred_check
      _
    $region31: #{tpu_custom_call.1} parent=1 // pred_check_branch
      %102 = sbr.rel (0) target = $region33
    $region32: #{tpu_custom_call.1} parent=1 // pred_region
      %103 = dma.done [#allocation7], 512
    $region33: #{tpu_custom_call.1} parent=1 // pred_fallthru
      _
    // Predicated region
    $region34: #{tpu_custom_call.1} parent=1 // pred_check
      _
    $region35: #{tpu_custom_call.1} parent=1 // pred_check_branch
      %105 = sbr.rel (0) target = $region37
    $region36: #{tpu_custom_call.1} parent=1 // pred_region
      %106 = dma.done [#allocation10], 512
    $region37: #{tpu_custom_call.1} parent=1 // pred_fallthru
      _
    // Predicated region
    $region38: #{tpu_custom_call.1} parent=1 // pred_check
      _
    $region39: #{tpu_custom_call.1} parent=1 // pred_check_branch
      %108 = sbr.rel (0) target = $region41
    $region40: #{tpu_custom_call.1} parent=1 // pred_region
      %109 = dma.done [#allocation10], 512
    $region41: #{tpu_custom_call.1} parent=1 // pred_fallthru
      _
    %s110 = sadd.s32 0, 0
    %p111 = scmp.lt.s32.totalorder %s110, 0
    %s112 = scalar_select %p111, %s110, 0
    %s113 = smul.u32 4, %s112
    %s114 = sadd.s32 0, 0
    %p115 = scmp.lt.s32.totalorder %s114, 0
    %s116 = scalar_select %p115, %s114, 0
    %s117 = smul.u32 4, %s116
    %s118 = sadd.s32 0, 0
    %p119 = scmp.lt.s32.totalorder %s118, 0
    %s120 = scalar_select %p119, %s118, 0
    %s121 = smul.u32 4, %s120
    %p122 = scmp.eq.s32.totalorder 0, 0
    // Predicated region
    $region42: #{tpu_custom_call.1} parent=1 // pred_check
      %p123 = pneg %p122
    $region43: #{tpu_custom_call.1} parent=1 // pred_check_branch
      %125 = sbr.rel (%p123) target = $region45
    $region44: #{tpu_custom_call.1} parent=1 // pred_region
      %vm126 = vcmask 261120
      %127 = vst.msk [vmem:[#allocation2] sm:$0xff] %vm126, 0.0
      %128 = vst.msk [vmem:[#allocation2 + $0x8] sm:$0xff] %vm126, 0.0
    $region45: #{tpu_custom_call.1} parent=1 // pred_fallthru
      _
    %s129 = sadd.s32 0, 0
    %s130 = smul.u32 %s129, 32
    %v131 = vlaneseq
    %v132 = vshrl.u32 %v131, 7
    %v133 = vadd.s32 %v132, 8
    %v134 = vadd.s32 %v132, 16
    %v135 = vadd.s32 %v132, 24
    %v136 = vstv %s130
    %v137 = vadd.s32 %v132, %v136
    %v138 = vadd.s32 %v133, %v136
    %v139 = vadd.s32 %v134, %v136
    %v140 = vadd.s32 %v135, %v136
    %vm141 = vcmp.lt.s32.totalorder %v137, 32
    %vm142 = vcmp.lt.s32.totalorder %v138, 32
    %vm143 = vcmp.lt.s32.totalorder %v139, 32
    %vm144 = vcmp.lt.s32.totalorder %v140, 32
    %v145 = vld [vmem:[#allocation8] sm:$0xff]
    %v146 = vld [vmem:[#allocation8 + $0x8] sm:$0xff]
    %v147 = vld [vmem:[#allocation8 + $0x10] sm:$0xff]
    %v148 = vld [vmem:[#allocation8 + $0x18] sm:$0xff]
    %v149 = vld [vmem:[#allocation3] sm:$0xff]
    %v150 = vld [vmem:[#allocation3 + $0x8] sm:$0xff]
    %v151 = vld [vmem:[#allocation3 + $0x10] sm:$0xff]
    %v152 = vld [vmem:[#allocation3 + $0x18] sm:$0xff]
    %v153 = vsub.f32 %v149, %v145
    %v154 = vsub.f32 %v150, %v146
    %v155 = vsub.f32 %v151, %v147
    %v156 = vsub.f32 %v152, %v148
    %v157 = vld [vmem:[#allocation6] sm:$0xff]
    %v158 = vld [vmem:[#allocation6 + $0x8] sm:$0xff]
    %v159 = vld [vmem:[#allocation6 + $0x10] sm:$0xff]
    %v160 = vld [vmem:[#allocation6 + $0x18] sm:$0xff]
    %v161 = vsub.f32 %v157, %v145
    %v162 = vsub.f32 %v158, %v146
    %v163 = vsub.f32 %v159, %v147
    %v164 = vsub.f32 %v160, %v148
    %v165 = vmul.f32 %v153, %v153
    %v166 = vmul.f32 %v154, %v154
    %v167 = vmul.f32 %v155, %v155
    %v168 = vmul.f32 %v156, %v156
    %v169 = vsel %vm141, 1, 0
    %v170 = vsel %vm142, 1, 0
    %v171 = vsel %vm143, 1, 0
    %v172 = vsel %vm144, 1, 0
    %vm173 = vcmp.eq.s32.totalorder %v169, 1
    %vm174 = vcmp.eq.s32.totalorder %v170, 1
    %vm175 = vcmp.eq.s32.totalorder %v171, 1
    %vm176 = vcmp.eq.s32.totalorder %v172, 1
    %v177 = vsel %vm173, %v165, 0.0
    %v178 = vsel %vm174, %v166, 0.0
    %v179 = vsel %vm175, %v167, 0.0
    %v180 = vsel %vm176, %v168, 0.0
    %v181 = vmul.f32 %v161, %v161
    %v182 = vmul.f32 %v162, %v162
    %v183 = vmul.f32 %v163, %v163
    %v184 = vmul.f32 %v164, %v164
    %v185 = vsel %vm173, %v181, 0.0
    %v186 = vsel %vm174, %v182, 0.0
    %v187 = vsel %vm175, %v183, 0.0
    %v188 = vsel %vm176, %v184, 0.0
    %v189 = vld [vmem:[#allocation2] sm:$0xff]
    %vm190 = vcmask 261120
    %v191 = vsel %vm190, %v177, 0.0
    %v192 = vsel %vm190, %v178, 0.0
    %v193 = vadd.f32 %v191, %v192
    %v194 = vsel %vm190, %v179, 0.0
    %v195 = vadd.f32 %v193, %v194
    %v196 = vsel %vm190, %v180, 0.0
    %v197 = vadd.f32 %v195, %v196
    %v198 = vadd.f32 %v189, %v197
    %199 = vst.msk [vmem:[#allocation2] sm:$0xff] %vm190, %v198
    %s200 = scalar_lea.vmem [#allocation2], 8
    %v201 = vld [vmem:[%s200] sm:$0xff]
    %v202 = vsel %vm190, %v185, 0.0
    %v203 = vsel %vm190, %v186, 0.0
    %v204 = vadd.f32 %v202, %v203
    %v205 = vsel %vm190, %v187, 0.0
    %v206 = vadd.f32 %v204, %v205
    %v207 = vsel %vm190, %v188, 0.0
    %v208 = vadd.f32 %v206, %v207
    %v209 = vadd.f32 %v201, %v208
    %210 = vst.msk [vmem:[%s200] sm:$0xff] %vm190, %v209
    // Predicated region
    $region46: #{tpu_custom_call.1} parent=1 // pred_check
      %p211 = pneg %p122
    $region47: #{tpu_custom_call.1} parent=1 // pred_check_branch
      %213 = sbr.rel (%p211) target = $region49
    $region48: #{tpu_custom_call.1} parent=1 // pred_region
      %v214 = vld [vmem:[#allocation9] sm:$0xff]
      %v215 = vld [vmem:[#allocation9 + $0x8] sm:$0xff]
      %v216 = vld [vmem:[#allocation9 + $0x10] sm:$0xff]
      %v217 = vld [vmem:[#allocation9 + $0x18] sm:$0xff]
      %v218 = vld [vmem:[#allocation11] sm:$0xff]
      %v219 = vld [vmem:[#allocation11 + $0x8] sm:$0xff]
      %v220 = vld [vmem:[#allocation11 + $0x10] sm:$0xff]
      %v221 = vld [vmem:[#allocation11 + $0x18] sm:$0xff]
      %v222 = vlaneseq
      %v223 = vand.u32 %v222, 127
      %s224 = smul.u32 0, 32
      %v225 = vstv %s224
      %v226 = vadd.s32 %v225, %v132
      %v227 = vadd.s32 %v225, %v133
      %v228 = vadd.s32 %v225, %v134
      %v229 = vadd.s32 %v225, %v135
      %v230 = vmul.u32 %v226, 128
      %v231 = vmul.u32 %v227, 128
      %v232 = vmul.u32 %v228, 128
      %v233 = vmul.u32 %v229, 128
      %v234 = vadd.s32 %v230, %v223
      %v235 = vadd.s32 %v231, %v223
      %v236 = vadd.s32 %v232, %v223
      %v237 = vadd.s32 %v233, %v223
      %v238 = vmax.f32 %v214, 0.0
      %v239 = vmax.f32 %v215, 0.0
      %v240 = vmax.f32 %v216, 0.0
      %v241 = vmax.f32 %v217, 0.0
      %v242 = vmul.f32 %v214, %v218
      %v243 = vmul.f32 %v215, %v219
      %v244 = vmul.f32 %v216, %v220
      %v245 = vmul.f32 %v217, %v221
      %v246 = vsub.f32 %v238, %v242
      %v247 = vsub.f32 %v239, %v243
      %v248 = vsub.f32 %v240, %v244
      %v249 = vsub.f32 %v241, %v245
      %v250 = vand.u32 2147483647, %v214
      %v251 = vand.u32 2147483647, %v215
      %v252 = vand.u32 2147483647, %v216
      %v253 = vand.u32 2147483647, %v217
      %v254 = vsub.f32 0.0, %v250
      %v255 = vsub.f32 0.0, %v251
      %v256 = vsub.f32 0.0, %v252
      %v257 = vsub.f32 0.0, %v253
      %v258 = vmul.f32 %v254, 1.442695
      %v259 = vpow.pop %v258
      %v260 = vmul.f32 %v255, 1.442695
      %v261 = vpow.pop %v260
      %v262 = vmul.f32 %v256, 1.442695
      %v263 = vpow.pop %v262
      %v264 = vmul.f32 %v257, 1.442695
      %v265 = vpow.pop %v264
      %v266 = vadd.f32 %v259, 1.0
      %v267 = vlog2.pop %v266
      %v268 = vmul.f32 %v267, 0.6931472
      %v269 = vmul.f32 -0.5, %v259
      %v270 = vadd.f32 %v269, 1.0
      %v271 = vmul.f32 %v270, %v259
      %v272 = vand.u32 2147483647, %v259
      %vm273 = vcmp.lt.f32.partialorder %v272, 0.0004427343
      %v274 = vsel %vm273, %v271, %v268
      %v275 = vadd.f32 %v261, 1.0
      %v276 = vlog2.pop %v275
      %v277 = vmul.f32 %v276, 0.6931472
      %v278 = vmul.f32 -0.5, %v261
      %v279 = vadd.f32 %v278, 1.0
      %v280 = vmul.f32 %v279, %v261
      %v281 = vand.u32 2147483647, %v261
      %vm282 = vcmp.lt.f32.partialorder %v281, 0.0004427343
      %v283 = vsel %vm282, %v280, %v277
      %v284 = vadd.f32 %v263, 1.0
      %v285 = vlog2.pop %v284
      %v286 = vmul.f32 %v285, 0.6931472
      %v287 = vmul.f32 -0.5, %v263
      %v288 = vadd.f32 %v287, 1.0
      %v289 = vmul.f32 %v288, %v263
      %v290 = vand.u32 2147483647, %v263
      %vm291 = vcmp.lt.f32.partialorder %v290, 0.0004427343
      %v292 = vsel %vm291, %v289, %v286
      %v293 = vadd.f32 %v265, 1.0
      %v294 = vlog2.pop %v293
      %v295 = vmul.f32 %v294, 0.6931472
      %v296 = vmul.f32 -0.5, %v265
      %v297 = vadd.f32 %v296, 1.0
      %v298 = vmul.f32 %v297, %v265
      %v299 = vand.u32 2147483647, %v265
      %vm300 = vcmp.lt.f32.partialorder %v299, 0.0004427343
      %v301 = vsel %vm300, %v298, %v295
      %v302 = vadd.f32 %v246, %v274
      %v303 = vadd.f32 %v247, %v283
      %v304 = vadd.f32 %v248, %v292
      %v305 = vadd.f32 %v249, %v301
      %vm306 = vcmp.lt.s32.totalorder %v234, 32
      %vm307 = vcmp.lt.s32.totalorder %v235, 32
      %vm308 = vcmp.lt.s32.totalorder %v236, 32
      %vm309 = vcmp.lt.s32.totalorder %v237, 32
      %v310 = vsel %vm306, %v302, 0.0
      %v311 = vsel %vm307, %v303, 0.0
      %v312 = vsel %vm308, %v304, 0.0
      %v313 = vsel %vm309, %v305, 0.0
      %v314 = vld [vmem:[#allocation2] sm:$0xff]
      %v315 = vld [vmem:[#allocation2 + $0x8] sm:$0xff]
      %316 = vst.msk [vmem:[#allocation12] sm:$0xff] %vm190, %v314
      %317 = vst.msk [vmem:[#allocation12 + $0x8] sm:$0xff] %vm190, %v315
      %v318 = vadd.f32 %v310, %v311
      %v319 = vadd.f32 %v318, %v312
      %v320 = vadd.f32 %v319, %v313
      %321 = vst [vmem:[#allocation13] sm:$0xff] %v320
    $region49: #{tpu_custom_call.1} parent=1 // pred_fallthru
      _
    // Predicated region
    $region50: #{tpu_custom_call.1} parent=1 // pred_check
      _
    $region51: #{tpu_custom_call.1} parent=1 // pred_check_branch
      %323 = sbr.rel (0) target = $region53
    $region52: #{tpu_custom_call.1} parent=1 // pred_region
      %s325 = ssub.s32 256, 256
      %326 = vsyncadd [#allocation5], %s325
      %s327 = sshll.u32 [#allocation12], 4
      %s328 = int_to_ptr.vmem [resolvable:$true] %s327
      %333 = dma.vmem_to_hbm [thread:$0]  %s328, 256, %s5, [#allocation5], 128, 128, 8
    $region53: #{tpu_custom_call.1} parent=1 // pred_fallthru
      _
    // Predicated region
    $region54: #{tpu_custom_call.1} parent=1 // pred_check
      _
    $region55: #{tpu_custom_call.1} parent=1 // pred_check_branch
      %335 = sbr.rel (0) target = $region57
    $region56: #{tpu_custom_call.1} parent=1 // pred_region
      %s337 = ssub.s32 128, 128
      %338 = vsyncadd [#allocation14], %s337
      %s340 = sshll.u32 [#allocation13], 4
      %s341 = int_to_ptr.vmem [resolvable:$true] %s340
      %343 = dma.vmem_to_hbm [thread:$0]  %s341, 128, %s6, [#allocation14]
    $region57: #{tpu_custom_call.1} parent=1 // pred_fallthru
      _
    // Predicated region
    $region58: #{tpu_custom_call.1} parent=1 // pred_check
      _
    $region59: #{tpu_custom_call.1} parent=1 // pred_check_branch
      %345 = sbr.rel (0) target = $region61
    $region60: #{tpu_custom_call.1} parent=1 // pred_region
      %346 = dma.done [#allocation5], 256
    $region61: #{tpu_custom_call.1} parent=1 // pred_fallthru
      _
    // Predicated region
    $region62: #{tpu_custom_call.1} parent=1 // pred_check
      _
    $region63: #{tpu_custom_call.1} parent=1 // pred_check_branch
      %348 = sbr.rel (0) target = $region65
    $region64: #{tpu_custom_call.1} parent=1 // pred_region
      %349 = dma.done [#allocation14], 128
    $region65: #{tpu_custom_call.1} parent=1 // pred_fallthru
      _
    %350 = vsyncpa [#allocation4], 1
    %351 = vsyncpa [#allocation7], 1
    %352 = vsyncpa [#allocation10], 1
    %353 = vsyncpa [#allocation5], 1
    %354 = vsyncpa [#allocation14], 1

</llo_original>
